<compile_context>
chip_gen: v7x
topology: tpu7x:2x2x1
jax: 0.10.0
libtpu: 0.0.40
codegen_flags: <defaults>
</compile_context>

<pallas_src>
import jax
import jax.numpy as jnp
from jax import lax
from jax.experimental import pallas as pl
from jax.experimental.pallas import tpu as pltpu


def _make_spa_kernel(tb):
    def spa_kernel(pr_ref, pc_ref, org_ref, enh_ref, e_ref):
        c = org_ref.shape[1]
        inv_c = jnp.float32(1.0 / c)
        pr = pr_ref[...]     # (Hp+2, H) zero-padded row-pooling matrix
        pc = pc_ref[...]     # (W, Wp+2) zero-padded col-pooling matrix

        def chan_mean(ref, t):
            m = ref[t, 0].astype(jnp.float32)
            for ci in range(1, c):
                m = m + ref[t, ci].astype(jnp.float32)
            return m * inv_c

        def pool_padded(x):  # (H, W) -> (Hp+2, Wp+2), zero border (MXU)
            return jnp.dot(
                jnp.dot(pr, x, preferred_element_type=jnp.float32),
                pc, preferred_element_type=jnp.float32)

        for t in range(tb):
            op = pool_padded(chan_mean(org_ref, t))
            ep = pool_padded(chan_mean(enh_ref, t))
            dpad = op - ep                    # zero-padded (org_pool - enh_pool)
            d = dpad[1:-1, 1:-1]
            dl = d - dpad[1:-1, :-2]          # d[y,x] - d[y,x-1]   (left)
            dr = d - dpad[1:-1, 2:]           # d[y,x] - d[y,x+1]   (right)
            du = d - dpad[:-2, 1:-1]          # d[y,x] - d[y-1,x]   (up)
            dd = d - dpad[2:, 1:-1]           # d[y,x] - d[y+1,x]   (down)
            e_ref[t] = dl * dl + dr * dr + du * du + dd * dd

    return spa_kernel


def l_spa(org, enhance):
    """Zero-DCE L_spa forward. org, enhance: (B, C, H, W) -> (B, 1, H//4, W//4)."""
    b, c, h, w = org.shape
    assert enhance.shape == org.shape
    # TODO(synk): PyTorch AvgPool2d(4) floors odd remainders; kernel assumes H, W % 4 == 0.
    assert h % 4 == 0 and w % 4 == 0, "H and W must be multiples of 4"
    hp, wp = h // 4, w // 4

    # Zero-padded pooling matrices: PR @ x @ PC = 4x4 avg-pool of x surrounded
    # by a zero border (so the directional convs become static slices).
    pool_r = ((jnp.arange(hp + 2)[:, None] == (jnp.arange(h)[None, :] // 4 + 1))
              .astype(jnp.float32) * 0.25)               # (Hp+2, H)
    pool_c = (((jnp.arange(w)[:, None] // 4 + 1) == jnp.arange(wp + 2)[None, :])
              .astype(jnp.float32) * 0.25)               # (W, Wp+2)

    # Batch tile: keep the per-step input block a few MiB; cap in-kernel unroll.
    itemsize = jnp.dtype(org.dtype).itemsize
    per_elem_bytes = 2 * c * h * w * itemsize
    tb = max(1, min(b, 8, (4 << 20) // max(per_elem_bytes, 1)))
    while b % tb:
        tb -= 1

    flops = b * (4 * c * h * w
                 + 2 * (2 * (hp + 2) * h * w + 2 * (hp + 2) * w * (wp + 2))
                 + 12 * hp * wp)
    bytes_accessed = 2 * b * c * h * w * itemsize + b * hp * wp * 4

    e = pl.pallas_call(
        _make_spa_kernel(tb),
        out_shape=jax.ShapeDtypeStruct((b, hp, wp), jnp.float32),
        grid_spec=pltpu.PrefetchScalarGridSpec(
            num_scalar_prefetch=0,
            grid=(b // tb,),
            in_specs=[
                pl.BlockSpec((hp + 2, h), lambda i: (0, 0)),
                pl.BlockSpec((w, wp + 2), lambda i: (0, 0)),
                pl.BlockSpec((tb, c, h, w), lambda i: (i, 0, 0, 0)),
                pl.BlockSpec((tb, c, h, w), lambda i: (i, 0, 0, 0)),
            ],
            out_specs=pl.BlockSpec((tb, hp, wp), lambda i: (i, 0, 0)),
        ),
        compiler_params=pltpu.CompilerParams(
            dimension_semantics=("parallel",),
        ),
        cost_estimate=pl.CostEstimate(
            flops=flops, transcendentals=0, bytes_accessed=bytes_accessed),
    )(pool_r, pool_c, org, enhance)
    return e[:, None, :, :]


def l_spa_ref(org, enhance):
    """Pure-JAX reference mirroring the PyTorch L_spa forward."""
    org_mean = jnp.mean(org, axis=1, keepdims=True)
    enh_mean = jnp.mean(enhance, axis=1, keepdims=True)

    def pool4(x):
        b_, c_, h_, w_ = x.shape
        return x.reshape(b_, c_, h_ // 4, 4, w_ // 4, 4).mean(axis=(3, 5))

    org_pool = pool4(org_mean)
    enh_pool = pool4(enh_mean)

    k_left = jnp.array([[0, 0, 0], [-1, 1, 0], [0, 0, 0]], jnp.float32)
    k_right = jnp.array([[0, 0, 0], [0, 1, -1], [0, 0, 0]], jnp.float32)
    k_up = jnp.array([[0, -1, 0], [0, 1, 0], [0, 0, 0]], jnp.float32)
    k_down = jnp.array([[0, 0, 0], [0, 1, 0], [0, -1, 0]], jnp.float32)

    def conv_dir(x, ker):
        return lax.conv_general_dilated(
            x, ker[None, None], window_strides=(1, 1),
            padding=((1, 1), (1, 1)),
            dimension_numbers=("NCHW", "OIHW", "NCHW"))

    e = jnp.zeros_like(org_pool)
    for ker in (k_left, k_right, k_up, k_down):
        diff = conv_dir(org_pool, ker) - conv_dir(enh_pool, ker)
        e = e + diff * diff
    return e


if __name__ == "__main__":
    key = jax.random.PRNGKey(0)
    k1, k2 = jax.random.split(key)
    org = jax.random.uniform(k1, (2, 4, 16, 16), dtype=jnp.float32)
    enh = jax.random.uniform(k2, (2, 4, 16, 16), dtype=jnp.float32)

    out = jax.block_until_ready(l_spa(org, enh))
    ref = jax.block_until_ready(l_spa_ref(org, enh))

    assert out.shape == ref.shape, (out.shape, ref.shape)
    assert jnp.allclose(out, ref, rtol=1e-5, atol=1e-6), (
        float(jnp.max(jnp.abs(out - ref))))
    print("KERNEL_OK")
</pallas_src>

<mosaic_0001>
module attributes {stable_mosaic.version = 11 : i64} {
  func.func @spa_kernel(%arg0: i32, %arg1: memref<6x16xf32, #tpu.memory_space<vmem>>, %arg2: memref<16x6xf32, #tpu.memory_space<vmem>>, %arg3: memref<2x4x16x16xf32, #tpu.memory_space<vmem>>, %arg4: memref<2x4x16x16xf32, #tpu.memory_space<vmem>>, %arg5: memref<2x4x4xf32, #tpu.memory_space<vmem>>) attributes {dimension_semantics = [#tpu.dimension_semantics<parallel>], iteration_bounds = array<i64: 1>, scalar_prefetch = 0 : i64, scratch_operands = 0 : i64, tpu.core_type = #tpu.core_type<tc>, window_params = [{pipeline_mode = #tpu.pipeline_mode<synchronous>, transform_indices = @transform_0, window_bounds = array<i64: 6, 16>}, {pipeline_mode = #tpu.pipeline_mode<synchronous>, transform_indices = @transform_1, window_bounds = array<i64: 16, 6>}, {transform_indices = @transform_2, window_bounds = array<i64: 2, 4, 16, 16>}, {transform_indices = @transform_3, window_bounds = array<i64: 2, 4, 16, 16>}, {transform_indices = @transform_4, window_bounds = array<i64: 2, 4, 4>}]} {
    %c0 = arith.constant 0 : index
    %c0_0 = arith.constant 0 : index
    %0 = vector.load %arg1[%c0, %c0_0] : memref<6x16xf32, #tpu.memory_space<vmem>>, vector<6x16xf32>
    %c0_1 = arith.constant 0 : index
    %c0_2 = arith.constant 0 : index
    %1 = vector.load %arg2[%c0_1, %c0_2] : memref<16x6xf32, #tpu.memory_space<vmem>>, vector<16x6xf32>
    %c0_3 = arith.constant 0 : index
    %c0_4 = arith.constant 0 : index
    %c0_5 = arith.constant 0 : index
    %c0_6 = arith.constant 0 : index
    %2 = vector.load %arg3[%c0_3, %c0_4, %c0_5, %c0_6] : memref<2x4x16x16xf32, #tpu.memory_space<vmem>>, vector<1x1x16x16xf32>
    %3 = vector.shape_cast %2 : vector<1x1x16x16xf32> to vector<16x16xf32>
    %c0_7 = arith.constant 0 : index
    %c1 = arith.constant 1 : index
    %c0_8 = arith.constant 0 : index
    %c0_9 = arith.constant 0 : index
    %4 = vector.load %arg3[%c0_7, %c1, %c0_8, %c0_9] : memref<2x4x16x16xf32, #tpu.memory_space<vmem>>, vector<1x1x16x16xf32>
    %5 = vector.shape_cast %4 : vector<1x1x16x16xf32> to vector<16x16xf32>
    %6 = arith.addf %3, %5 : vector<16x16xf32>
    %c0_10 = arith.constant 0 : index
    %c2 = arith.constant 2 : index
    %c0_11 = arith.constant 0 : index
    %c0_12 = arith.constant 0 : index
    %7 = vector.load %arg3[%c0_10, %c2, %c0_11, %c0_12] : memref<2x4x16x16xf32, #tpu.memory_space<vmem>>, vector<1x1x16x16xf32>
    %8 = vector.shape_cast %7 : vector<1x1x16x16xf32> to vector<16x16xf32>
    %9 = arith.addf %6, %8 : vector<16x16xf32>
    %c0_13 = arith.constant 0 : index
    %c3 = arith.constant 3 : index
    %c0_14 = arith.constant 0 : index
    %c0_15 = arith.constant 0 : index
    %10 = vector.load %arg3[%c0_13, %c3, %c0_14, %c0_15] : memref<2x4x16x16xf32, #tpu.memory_space<vmem>>, vector<1x1x16x16xf32>
    %11 = vector.shape_cast %10 : vector<1x1x16x16xf32> to vector<16x16xf32>
    %12 = arith.addf %9, %11 : vector<16x16xf32>
    %cst = arith.constant 2.500000e-01 : f32
    %13 = vector.broadcast %cst : f32 to vector<16x16xf32>
    %14 = arith.mulf %12, %13 : vector<16x16xf32>
    %cst_16 = arith.constant dense<0.000000e+00> : vector<6x16xf32>
    %15 = tpu.matmul %0, %14, %cst_16 {dimension_numbers = #tpu.dot_dimension_numbers<[1], [0], [0], [1], [0, 0, 1, 1], [], []>} : vector<6x16xf32>, vector<16x16xf32>, vector<6x16xf32> -> vector<6x16xf32>
    %cst_17 = arith.constant dense<0.000000e+00> : vector<6x6xf32>
    %16 = tpu.matmul %15, %1, %cst_17 {dimension_numbers = #tpu.dot_dimension_numbers<[1], [0], [0], [1], [0, 0, 1, 1], [], []>} : vector<6x16xf32>, vector<16x6xf32>, vector<6x6xf32> -> vector<6x6xf32>
    %c0_18 = arith.constant 0 : index
    %c0_19 = arith.constant 0 : index
    %c0_20 = arith.constant 0 : index
    %c0_21 = arith.constant 0 : index
    %17 = vector.load %arg4[%c0_18, %c0_19, %c0_20, %c0_21] : memref<2x4x16x16xf32, #tpu.memory_space<vmem>>, vector<1x1x16x16xf32>
    %18 = vector.shape_cast %17 : vector<1x1x16x16xf32> to vector<16x16xf32>
    %c0_22 = arith.constant 0 : index
    %c1_23 = arith.constant 1 : index
    %c0_24 = arith.constant 0 : index
    %c0_25 = arith.constant 0 : index
    %19 = vector.load %arg4[%c0_22, %c1_23, %c0_24, %c0_25] : memref<2x4x16x16xf32, #tpu.memory_space<vmem>>, vector<1x1x16x16xf32>
    %20 = vector.shape_cast %19 : vector<1x1x16x16xf32> to vector<16x16xf32>
    %21 = arith.addf %18, %20 : vector<16x16xf32>
    %c0_26 = arith.constant 0 : index
    %c2_27 = arith.constant 2 : index
    %c0_28 = arith.constant 0 : index
    %c0_29 = arith.constant 0 : index
    %22 = vector.load %arg4[%c0_26, %c2_27, %c0_28, %c0_29] : memref<2x4x16x16xf32, #tpu.memory_space<vmem>>, vector<1x1x16x16xf32>
    %23 = vector.shape_cast %22 : vector<1x1x16x16xf32> to vector<16x16xf32>
    %24 = arith.addf %21, %23 : vector<16x16xf32>
    %c0_30 = arith.constant 0 : index
    %c3_31 = arith.constant 3 : index
    %c0_32 = arith.constant 0 : index
    %c0_33 = arith.constant 0 : index
    %25 = vector.load %arg4[%c0_30, %c3_31, %c0_32, %c0_33] : memref<2x4x16x16xf32, #tpu.memory_space<vmem>>, vector<1x1x16x16xf32>
    %26 = vector.shape_cast %25 : vector<1x1x16x16xf32> to vector<16x16xf32>
    %27 = arith.addf %24, %26 : vector<16x16xf32>
    %cst_34 = arith.constant 2.500000e-01 : f32
    %28 = vector.broadcast %cst_34 : f32 to vector<16x16xf32>
    %29 = arith.mulf %27, %28 : vector<16x16xf32>
    %cst_35 = arith.constant dense<0.000000e+00> : vector<6x16xf32>
    %30 = tpu.matmul %0, %29, %cst_35 {dimension_numbers = #tpu.dot_dimension_numbers<[1], [0], [0], [1], [0, 0, 1, 1], [], []>} : vector<6x16xf32>, vector<16x16xf32>, vector<6x16xf32> -> vector<6x16xf32>
    %cst_36 = arith.constant dense<0.000000e+00> : vector<6x6xf32>
    %31 = tpu.matmul %30, %1, %cst_36 {dimension_numbers = #tpu.dot_dimension_numbers<[1], [0], [0], [1], [0, 0, 1, 1], [], []>} : vector<6x16xf32>, vector<16x6xf32>, vector<6x6xf32> -> vector<6x6xf32>
    %32 = arith.subf %16, %31 : vector<6x6xf32>
    %33 = vector.extract_strided_slice %32 {offsets = [1, 1], sizes = [4, 4], strides = [1, 1]} : vector<6x6xf32> to vector<4x4xf32>
    %34 = vector.extract_strided_slice %32 {offsets = [1, 0], sizes = [4, 4], strides = [1, 1]} : vector<6x6xf32> to vector<4x4xf32>
    %35 = arith.subf %33, %34 : vector<4x4xf32>
    %36 = vector.extract_strided_slice %32 {offsets = [1, 2], sizes = [4, 4], strides = [1, 1]} : vector<6x6xf32> to vector<4x4xf32>
    %37 = arith.subf %33, %36 : vector<4x4xf32>
    %38 = vector.extract_strided_slice %32 {offsets = [0, 1], sizes = [4, 4], strides = [1, 1]} : vector<6x6xf32> to vector<4x4xf32>
    %39 = arith.subf %33, %38 : vector<4x4xf32>
    %40 = vector.extract_strided_slice %32 {offsets = [2, 1], sizes = [4, 4], strides = [1, 1]} : vector<6x6xf32> to vector<4x4xf32>
    %41 = arith.subf %33, %40 : vector<4x4xf32>
    %42 = arith.mulf %35, %35 : vector<4x4xf32>
    %43 = arith.mulf %37, %37 : vector<4x4xf32>
    %44 = arith.addf %42, %43 : vector<4x4xf32>
    %45 = arith.mulf %39, %39 : vector<4x4xf32>
    %46 = arith.addf %44, %45 : vector<4x4xf32>
    %47 = arith.mulf %41, %41 : vector<4x4xf32>
    %48 = arith.addf %46, %47 : vector<4x4xf32>
    %c0_37 = arith.constant 0 : index
    %c0_38 = arith.constant 0 : index
    %c0_39 = arith.constant 0 : index
    %49 = vector.load %arg5[%c0_37, %c0_38, %c0_39] : memref<2x4x4xf32, #tpu.memory_space<vmem>>, vector<1x4x4xf32>
    %50 = vector.shape_cast %49 : vector<1x4x4xf32> to vector<4x4xf32>
    %51 = vector.shape_cast %48 : vector<4x4xf32> to vector<1x4x4xf32>
    tpu.vector_store %arg5[%c0_37, %c0_38, %c0_39], %51 {strides = array<i32>} : memref<2x4x4xf32, #tpu.memory_space<vmem>>, vector<1x4x4xf32>,
    %c1_40 = arith.constant 1 : index
    %c0_41 = arith.constant 0 : index
    %c0_42 = arith.constant 0 : index
    %c0_43 = arith.constant 0 : index
    %52 = vector.load %arg3[%c1_40, %c0_41, %c0_42, %c0_43] : memref<2x4x16x16xf32, #tpu.memory_space<vmem>>, vector<1x1x16x16xf32>
    %53 = vector.shape_cast %52 : vector<1x1x16x16xf32> to vector<16x16xf32>
    %c1_44 = arith.constant 1 : index
    %c1_45 = arith.constant 1 : index
    %c0_46 = arith.constant 0 : index
    %c0_47 = arith.constant 0 : index
    %54 = vector.load %arg3[%c1_44, %c1_45, %c0_46, %c0_47] : memref<2x4x16x16xf32, #tpu.memory_space<vmem>>, vector<1x1x16x16xf32>
    %55 = vector.shape_cast %54 : vector<1x1x16x16xf32> to vector<16x16xf32>
    %56 = arith.addf %53, %55 : vector<16x16xf32>
    %c1_48 = arith.constant 1 : index
    %c2_49 = arith.constant 2 : index
    %c0_50 = arith.constant 0 : index
    %c0_51 = arith.constant 0 : index
    %57 = vector.load %arg3[%c1_48, %c2_49, %c0_50, %c0_51] : memref<2x4x16x16xf32, #tpu.memory_space<vmem>>, vector<1x1x16x16xf32>
    %58 = vector.shape_cast %57 : vector<1x1x16x16xf32> to vector<16x16xf32>
    %59 = arith.addf %56, %58 : vector<16x16xf32>
    %c1_52 = arith.constant 1 : index
    %c3_53 = arith.constant 3 : index
    %c0_54 = arith.constant 0 : index
    %c0_55 = arith.constant 0 : index
    %60 = vector.load %arg3[%c1_52, %c3_53, %c0_54, %c0_55] : memref<2x4x16x16xf32, #tpu.memory_space<vmem>>, vector<1x1x16x16xf32>
    %61 = vector.shape_cast %60 : vector<1x1x16x16xf32> to vector<16x16xf32>
    %62 = arith.addf %59, %61 : vector<16x16xf32>
    %cst_56 = arith.constant 2.500000e-01 : f32
    %63 = vector.broadcast %cst_56 : f32 to vector<16x16xf32>
    %64 = arith.mulf %62, %63 : vector<16x16xf32>
    %cst_57 = arith.constant dense<0.000000e+00> : vector<6x16xf32>
    %65 = tpu.matmul %0, %64, %cst_57 {dimension_numbers = #tpu.dot_dimension_numbers<[1], [0], [0], [1], [0, 0, 1, 1], [], []>} : vector<6x16xf32>, vector<16x16xf32>, vector<6x16xf32> -> vector<6x16xf32>
    %cst_58 = arith.constant dense<0.000000e+00> : vector<6x6xf32>
    %66 = tpu.matmul %65, %1, %cst_58 {dimension_numbers = #tpu.dot_dimension_numbers<[1], [0], [0], [1], [0, 0, 1, 1], [], []>} : vector<6x16xf32>, vector<16x6xf32>, vector<6x6xf32> -> vector<6x6xf32>
    %c1_59 = arith.constant 1 : index
    %c0_60 = arith.constant 0 : index
    %c0_61 = arith.constant 0 : index
    %c0_62 = arith.constant 0 : index
    %67 = vector.load %arg4[%c1_59, %c0_60, %c0_61, %c0_62] : memref<2x4x16x16xf32, #tpu.memory_space<vmem>>, vector<1x1x16x16xf32>
    %68 = vector.shape_cast %67 : vector<1x1x16x16xf32> to vector<16x16xf32>
    %c1_63 = arith.constant 1 : index
    %c1_64 = arith.constant 1 : index
    %c0_65 = arith.constant 0 : index
    %c0_66 = arith.constant 0 : index
    %69 = vector.load %arg4[%c1_63, %c1_64, %c0_65, %c0_66] : memref<2x4x16x16xf32, #tpu.memory_space<vmem>>, vector<1x1x16x16xf32>
    %70 = vector.shape_cast %69 : vector<1x1x16x16xf32> to vector<16x16xf32>
    %71 = arith.addf %68, %70 : vector<16x16xf32>
    %c1_67 = arith.constant 1 : index
    %c2_68 = arith.constant 2 : index
    %c0_69 = arith.constant 0 : index
    %c0_70 = arith.constant 0 : index
    %72 = vector.load %arg4[%c1_67, %c2_68, %c0_69, %c0_70] : memref<2x4x16x16xf32, #tpu.memory_space<vmem>>, vector<1x1x16x16xf32>
    %73 = vector.shape_cast %72 : vector<1x1x16x16xf32> to vector<16x16xf32>
    %74 = arith.addf %71, %73 : vector<16x16xf32>
    %c1_71 = arith.constant 1 : index
    %c3_72 = arith.constant 3 : index
    %c0_73 = arith.constant 0 : index
    %c0_74 = arith.constant 0 : index
    %75 = vector.load %arg4[%c1_71, %c3_72, %c0_73, %c0_74] : memref<2x4x16x16xf32, #tpu.memory_space<vmem>>, vector<1x1x16x16xf32>
    %76 = vector.shape_cast %75 : vector<1x1x16x16xf32> to vector<16x16xf32>
    %77 = arith.addf %74, %76 : vector<16x16xf32>
    %cst_75 = arith.constant 2.500000e-01 : f32
    %78 = vector.broadcast %cst_75 : f32 to vector<16x16xf32>
    %79 = arith.mulf %77, %78 : vector<16x16xf32>
    %cst_76 = arith.constant dense<0.000000e+00> : vector<6x16xf32>
    %80 = tpu.matmul %0, %79, %cst_76 {dimension_numbers = #tpu.dot_dimension_numbers<[1], [0], [0], [1], [0, 0, 1, 1], [], []>} : vector<6x16xf32>, vector<16x16xf32>, vector<6x16xf32> -> vector<6x16xf32>
    %cst_77 = arith.constant dense<0.000000e+00> : vector<6x6xf32>
    %81 = tpu.matmul %80, %1, %cst_77 {dimension_numbers = #tpu.dot_dimension_numbers<[1], [0], [0], [1], [0, 0, 1, 1], [], []>} : vector<6x16xf32>, vector<16x6xf32>, vector<6x6xf32> -> vector<6x6xf32>
    %82 = arith.subf %66, %81 : vector<6x6xf32>
    %83 = vector.extract_strided_slice %82 {offsets = [1, 1], sizes = [4, 4], strides = [1, 1]} : vector<6x6xf32> to vector<4x4xf32>
    %84 = vector.extract_strided_slice %82 {offsets = [1, 0], sizes = [4, 4], strides = [1, 1]} : vector<6x6xf32> to vector<4x4xf32>
    %85 = arith.subf %83, %84 : vector<4x4xf32>
    %86 = vector.extract_strided_slice %82 {offsets = [1, 2], sizes = [4, 4], strides = [1, 1]} : vector<6x6xf32> to vector<4x4xf32>
    %87 = arith.subf %83, %86 : vector<4x4xf32>
    %88 = vector.extract_strided_slice %82 {offsets = [0, 1], sizes = [4, 4], strides = [1, 1]} : vector<6x6xf32> to vector<4x4xf32>
    %89 = arith.subf %83, %88 : vector<4x4xf32>
    %90 = vector.extract_strided_slice %82 {offsets = [2, 1], sizes = [4, 4], strides = [1, 1]} : vector<6x6xf32> to vector<4x4xf32>
    %91 = arith.subf %83, %90 : vector<4x4xf32>
    %92 = arith.mulf %85, %85 : vector<4x4xf32>
    %93 = arith.mulf %87, %87 : vector<4x4xf32>
    %94 = arith.addf %92, %93 : vector<4x4xf32>
    %95 = arith.mulf %89, %89 : vector<4x4xf32>
    %96 = arith.addf %94, %95 : vector<4x4xf32>
    %97 = arith.mulf %91, %91 : vector<4x4xf32>
    %98 = arith.addf %96, %97 : vector<4x4xf32>
    %c1_78 = arith.constant 1 : index
    %c0_79 = arith.constant 0 : index
    %c0_80 = arith.constant 0 : index
    %99 = vector.load %arg5[%c1_78, %c0_79, %c0_80] : memref<2x4x4xf32, #tpu.memory_space<vmem>>, vector<1x4x4xf32>
    %100 = vector.shape_cast %99 : vector<1x4x4xf32> to vector<4x4xf32>
    %101 = vector.shape_cast %98 : vector<4x4xf32> to vector<1x4x4xf32>
    tpu.vector_store %arg5[%c1_78, %c0_79, %c0_80], %101 {strides = array<i32>} : memref<2x4x4xf32, #tpu.memory_space<vmem>>, vector<1x4x4xf32>,
    return
  }
  func.func @transform_0(%arg0: i32) -> (i32, i32) {
    %c0_i32 = arith.constant 0 : i32
    %c0_i32_0 = arith.constant 0 : i32
    %c0_i32_1 = arith.constant 0 : i32
    return %c0_i32, %c0_i32_0 : i32, i32
  }
  func.func @transform_1(%arg0: i32) -> (i32, i32) {
    %c0_i32 = arith.constant 0 : i32
    %c0_i32_0 = arith.constant 0 : i32
    %c0_i32_1 = arith.constant 0 : i32
    return %c0_i32, %c0_i32_0 : i32, i32
  }
  func.func @transform_2(%arg0: i32) -> (i32, i32, i32, i32) {
    %c0_i32 = arith.constant 0 : i32
    %c0_i32_0 = arith.constant 0 : i32
    %c0_i32_1 = arith.constant 0 : i32
    %c0_i32_2 = arith.constant 0 : i32
    return %arg0, %c0_i32, %c0_i32_0, %c0_i32_1 : i32, i32, i32, i32
  }
  func.func @transform_3(%arg0: i32) -> (i32, i32, i32, i32) {
    %c0_i32 = arith.constant 0 : i32
    %c0_i32_0 = arith.constant 0 : i32
    %c0_i32_1 = arith.constant 0 : i32
    %c0_i32_2 = arith.constant 0 : i32
    return %arg0, %c0_i32, %c0_i32_0, %c0_i32_1 : i32, i32, i32, i32
  }
  func.func @transform_4(%arg0: i32) -> (i32, i32, i32) {
    %c0_i32 = arith.constant 0 : i32
    %c0_i32_0 = arith.constant 0 : i32
    %c0_i32_1 = arith.constant 0 : i32
    return %arg0, %c0_i32, %c0_i32_0 : i32, i32, i32
  }
}

</mosaic_0001>

<llo_original>
// kernel: tpu_custom_call.1
$region0: #{tpu_custom_call.1}
  #allocation0 [shape = 'u32[]', space=smem, size = 0x4, offset = 0x4, fixed_abs, tag = 'smem constant byte address 0x4 - core index']
  #allocation1 [shape = 'u32[144,128]{1,0:T(1,128)}', space=vmem, size = 0x12000, scoped, tag = 'internal scratch']
  %s0 = inlined_call_operand.vmem [shape: f32[6,16], index: 0, kind: input, shape index: {}]
  %s1 = inlined_call_operand.vmem [shape: f32[16,6], index: 1, kind: input, shape index: {}]
  %s2 = inlined_call_operand.hbm [shape: f32[2,4,16,16], index: 2, kind: input, shape index: {}]
  %s3 = inlined_call_operand.hbm [shape: f32[2,4,16,16], index: 3, kind: input, shape index: {}]
  %s4 = inlined_call_operand.hbm [shape: f32[2,4,4], index: 4, kind: output, shape index: {}]
  %s5 = sld [smem:[#allocation0]]
  $region34: #{tpu_custom_call.1} parent=0
    _
  %s7 = ssub.s32 1, %s5
  %s8 = scalar_select 0, %s7, %s5
  $region1: #{tpu_custom_call.1} parent=0
    #allocation2 [shape = 'u8[65536]{0}', space=vmem, size = 0x10000, scoped, tag = 'input window, operand 2, single buffered']
    #allocation3 [shape = 's32[1]{0}', space=sflag, size = 0x4, scoped, tag = 'scoped memory for tpu_custom_call.1']
    #allocation4 [shape = 's32[1]{0}', space=sflag, size = 0x4, scoped, tag = 'scoped memory for tpu_custom_call.1']
    #allocation5 [shape = 'u8[65536]{0}', space=vmem, size = 0x10000, scoped, tag = 'input window, operand 3, single buffered']
    #allocation6 [shape = 's32[1]{0}', space=sflag, size = 0x4, scoped, tag = 'scoped memory for tpu_custom_call.1']
    #allocation7 [shape = 'u8[4096]{0}', space=vmem, size = 0x1000, scoped, tag = 'output window, operand 0, single buffered']
    %9 = vsyncpa [#allocation3], 0
    %10 = vsyncpa [#allocation6], 0
    %11 = vsyncpa [#allocation4], 0
    // Predicated region
    $region2: #{tpu_custom_call.1} parent=1 // pred_check
      _
    $region3: #{tpu_custom_call.1} parent=1 // pred_check_branch
      %13 = sbr.rel (0) target = $region5
    $region4: #{tpu_custom_call.1} parent=1 // pred_region
      _
    $region5: #{tpu_custom_call.1} parent=1 // pred_fallthru
      _
    // Predicated region
    $region6: #{tpu_custom_call.1} parent=1 // pred_check
      _
    $region7: #{tpu_custom_call.1} parent=1 // pred_check_branch
      %15 = sbr.rel (0) target = $region9
    $region8: #{tpu_custom_call.1} parent=1 // pred_region
      _
    $region9: #{tpu_custom_call.1} parent=1 // pred_fallthru
      _
    // Predicated region
    $region10: #{tpu_custom_call.1} parent=1 // pred_check
      _
    $region11: #{tpu_custom_call.1} parent=1 // pred_check_branch
      %17 = sbr.rel (0) target = $region13
    $region12: #{tpu_custom_call.1} parent=1 // pred_region
      %s19 = ssub.s32 2048, 2048
      %20 = vsyncadd [#allocation3], %s19
      %s21 = sshll.u32 [#allocation2], 4
      %s22 = int_to_ptr.vmem [resolvable:$true] %s21
      %27 = dma.hbm_to_vmem [thread:$0]  %s2, 2048, %s22, [#allocation3], 128, 128, 8
    $region13: #{tpu_custom_call.1} parent=1 // pred_fallthru
      _
    // Predicated region
    $region14: #{tpu_custom_call.1} parent=1 // pred_check
      _
    $region15: #{tpu_custom_call.1} parent=1 // pred_check_branch
      %29 = sbr.rel (0) target = $region17
    $region16: #{tpu_custom_call.1} parent=1 // pred_region
      %s31 = ssub.s32 2048, 2048
      %32 = vsyncadd [#allocation6], %s31
      %s33 = sshll.u32 [#allocation5], 4
      %s34 = int_to_ptr.vmem [resolvable:$true] %s33
      %39 = dma.hbm_to_vmem [thread:$0]  %s3, 2048, %s34, [#allocation6], 128, 128, 8
    $region17: #{tpu_custom_call.1} parent=1 // pred_fallthru
      _
    // Predicated region
    $region18: #{tpu_custom_call.1} parent=1 // pred_check
      _
    $region19: #{tpu_custom_call.1} parent=1 // pred_check_branch
      %41 = sbr.rel (0) target = $region21
    $region20: #{tpu_custom_call.1} parent=1 // pred_region
      %42 = dma.done [#allocation3], 2048
    $region21: #{tpu_custom_call.1} parent=1 // pred_fallthru
      _
    // Predicated region
    $region22: #{tpu_custom_call.1} parent=1 // pred_check
      _
    $region23: #{tpu_custom_call.1} parent=1 // pred_check_branch
      %44 = sbr.rel (0) target = $region25
    $region24: #{tpu_custom_call.1} parent=1 // pred_region
      %45 = dma.done [#allocation6], 2048
    $region25: #{tpu_custom_call.1} parent=1 // pred_fallthru
      _
    %v46 = vld [vmem:[%s0] sm:$0x3f]
    %v47 = vld [vmem:[%s1] sm:$0xff]
    %v48 = vld [vmem:[%s1 + $0x8] sm:$0xff]
    %v49 = vld [vmem:[#allocation2] sm:$0xff]
    %v50 = vld [vmem:[#allocation2 + $0x8] sm:$0xff]
    %s51 = scalar_lea.vmem [#allocation2], 16
    %v52 = vld [vmem:[%s51] sm:$0xff]
    %v53 = vld [vmem:[%s51 + $0x8] sm:$0xff]
    %v54 = vadd.f32 %v49, %v52
    %v55 = vadd.f32 %v50, %v53
    %s56 = scalar_lea.vmem [#allocation2], 32
    %v57 = vld [vmem:[%s56] sm:$0xff]
    %v58 = vld [vmem:[%s56 + $0x8] sm:$0xff]
    %v59 = vadd.f32 %v54, %v57
    %v60 = vadd.f32 %v55, %v58
    %s61 = scalar_lea.vmem [#allocation2], 48
    %v62 = vld [vmem:[%s61] sm:$0xff]
    %v63 = vld [vmem:[%s61 + $0x8] sm:$0xff]
    %v64 = vadd.f32 %v59, %v62
    %v65 = vadd.f32 %v60, %v63
    %v66 = vmul.f32 %v64, 0.25
    %v67 = vmul.f32 %v65, 0.25
    %vm68 = vcmask 130048
    %v70 = vsel %vm68, %v46, 0
    %72 = vmatprep.subr.mxu0 0.0
    %73 = vmatpush1.msra.mxu0 %v66
    %74 = vmatprep.subr.mxu0 0.0
    %75 = vmatpush1.msra.mxu0 %v67
    %76 = vmatprep.subr.mxu0 0.0
    %77 = vmatpush1.msra.mxu0 0.0
    %78 = vmatprep.subr.mxu0 0.0
    %79 = vmatpush1.msra.mxu0 0.0
    %80 = vmatprep.subr.mxu0 0.0
    %81 = vmatpush1.msra.mxu0 0.0
    %82 = vmatprep.subr.mxu0 0.0
    %83 = vmatpush1.msra.mxu0 0.0
    %84 = vmatprep.subr.mxu0 0.0
    %85 = vmatpush1.msra.mxu0 0.0
    %86 = vmatprep.subr.mxu0 0.0
    %87 = vmatpush1.msra.mxu0 0.0
    %88 = vmatprep.subr.mxu0 0.0
    %89 = vmatpush1.msra.mxu0 0.0
    %90 = vmatprep.subr.mxu0 0.0
    %91 = vmatpush1.msra.mxu0 0.0
    %92 = vmatprep.subr.mxu0 0.0
    %93 = vmatpush1.msra.mxu0 0.0
    %94 = vmatprep.subr.mxu0 0.0
    %95 = vmatpush1.msra.mxu0 0.0
    %96 = vmatprep.subr.mxu0 0.0
    %97 = vmatpush1.msra.mxu0 0.0
    %98 = vmatprep.subr.mxu0 0.0
    %99 = vmatpush1.msra.mxu0 0.0
    %100 = vmatprep.subr.mxu0 0.0
    %101 = vmatpush1.msra.mxu0 0.0
    %102 = vmatprep.subr.mxu0 0.0
    %103 = vmatpush1.msra.mxu0 0.0
    %104 = vmatprep.subr.mxu0 0.0
    %105 = vmatpush1.msra.mxu0 0.0
    %106 = vmatprep.subr.mxu0 0.0
    %107 = vmatpush1.msra.mxu0 0.0
    %108 = vmatprep.subr.mxu0 0.0
    %109 = vmatpush1.msra.mxu0 0.0
    %110 = vmatprep.subr.mxu0 0.0
    %111 = vmatpush1.msra.mxu0 0.0
    %112 = vmatprep.subr.mxu0 0.0
    %113 = vmatpush1.msra.mxu0 0.0
    %114 = vmatprep.subr.mxu0 0.0
    %115 = vmatpush1.msra.mxu0 0.0
    %116 = vmatprep.subr.mxu0 0.0
    %117 = vmatpush1.msra.mxu0 0.0
    %118 = vmatprep.subr.mxu0 0.0
    %119 = vmatpush1.msra.mxu0 0.0
    %120 = vmatprep.subr.mxu0 0.0
    %121 = vmatpush1.msra.mxu0 0.0
    %122 = vmatprep.subr.mxu0 0.0
    %123 = vmatpush1.msra.mxu0 0.0
    %124 = vmatprep.subr.mxu0 0.0
    %125 = vmatpush1.msra.mxu0 0.0
    %126 = vmatprep.subr.mxu0 0.0
    %127 = vmatpush1.msra.mxu0 0.0
    %128 = vmatprep.subr.mxu0 0.0
    %129 = vmatpush1.msra.mxu0 0.0
    %130 = vmatprep.subr.mxu0 0.0
    %131 = vmatpush1.msra.mxu0 0.0
    %132 = vmatprep.subr.mxu0 0.0
    %133 = vmatpush1.msra.mxu0 0.0
    %134 = vmatprep.subr.mxu0 0.0
    %135 = vmatpush1.msra.mxu0 0.0
    %136 = vmatprep.mubr.f32.mxu0 0.0
    %137 = vmatmul.mubr.f32.gmra.mrb[0].mxu0 %v70
    %v138 = vpop.f32.mrb[0].mxu0
    %v139 = vadd.f32 0.0, %v138
    %v140 = vpop.f32.mrb[0].mxu0
    %141 = vdwg.mxu0
    %v143 = vsel %vm68, %v139, 0
    %145 = vmatprep.subr.mxu0 0.0
    %146 = vmatpush1.msra.mxu0 %v47
    %147 = vmatprep.subr.mxu0 0.0
    %148 = vmatpush1.msra.mxu0 %v48
    %149 = vmatprep.subr.mxu0 0.0
    %150 = vmatpush1.msra.mxu0 0.0
    %151 = vmatprep.subr.mxu0 0.0
    %152 = vmatpush1.msra.mxu0 0.0
    %153 = vmatprep.subr.mxu0 0.0
    %154 = vmatpush1.msra.mxu0 0.0
    %155 = vmatprep.subr.mxu0 0.0
    %156 = vmatpush1.msra.mxu0 0.0
    %157 = vmatprep.subr.mxu0 0.0
    %158 = vmatpush1.msra.mxu0 0.0
    %159 = vmatprep.subr.mxu0 0.0
    %160 = vmatpush1.msra.mxu0 0.0
    %161 = vmatprep.subr.mxu0 0.0
    %162 = vmatpush1.msra.mxu0 0.0
    %163 = vmatprep.subr.mxu0 0.0
    %164 = vmatpush1.msra.mxu0 0.0
    %165 = vmatprep.subr.mxu0 0.0
    %166 = vmatpush1.msra.mxu0 0.0
    %167 = vmatprep.subr.mxu0 0.0
    %168 = vmatpush1.msra.mxu0 0.0
    %169 = vmatprep.subr.mxu0 0.0
    %170 = vmatpush1.msra.mxu0 0.0
    %171 = vmatprep.subr.mxu0 0.0
    %172 = vmatpush1.msra.mxu0 0.0
    %173 = vmatprep.subr.mxu0 0.0
    %174 = vmatpush1.msra.mxu0 0.0
    %175 = vmatprep.subr.mxu0 0.0
    %176 = vmatpush1.msra.mxu0 0.0
    %177 = vmatprep.subr.mxu0 0.0
    %178 = vmatpush1.msra.mxu0 0.0
    %179 = vmatprep.subr.mxu0 0.0
    %180 = vmatpush1.msra.mxu0 0.0
    %181 = vmatprep.subr.mxu0 0.0
    %182 = vmatpush1.msra.mxu0 0.0
    %183 = vmatprep.subr.mxu0 0.0
    %184 = vmatpush1.msra.mxu0 0.0
    %185 = vmatprep.subr.mxu0 0.0
    %186 = vmatpush1.msra.mxu0 0.0
    %187 = vmatprep.subr.mxu0 0.0
    %188 = vmatpush1.msra.mxu0 0.0
    %189 = vmatprep.subr.mxu0 0.0
    %190 = vmatpush1.msra.mxu0 0.0
    %191 = vmatprep.subr.mxu0 0.0
    %192 = vmatpush1.msra.mxu0 0.0
    %193 = vmatprep.subr.mxu0 0.0
    %194 = vmatpush1.msra.mxu0 0.0
    %195 = vmatprep.subr.mxu0 0.0
    %196 = vmatpush1.msra.mxu0 0.0
    %197 = vmatprep.subr.mxu0 0.0
    %198 = vmatpush1.msra.mxu0 0.0
    %199 = vmatprep.subr.mxu0 0.0
    %200 = vmatpush1.msra.mxu0 0.0
    %201 = vmatprep.subr.mxu0 0.0
    %202 = vmatpush1.msra.mxu0 0.0
    %203 = vmatprep.subr.mxu0 0.0
    %204 = vmatpush1.msra.mxu0 0.0
    %205 = vmatprep.subr.mxu0 0.0
    %206 = vmatpush1.msra.mxu0 0.0
    %207 = vmatprep.subr.mxu0 0.0
    %208 = vmatpush1.msra.mxu0 0.0
    %209 = vmatprep.mubr.f32.mxu0 0.0
    %210 = vmatmul.mubr.f32.gmra.mrb[0].mxu0 %v143
    %v211 = vpop.f32.mrb[0].mxu0
    %v212 = vadd.f32 0.0, %v211
    %v213 = vpop.f32.mrb[0].mxu0
    %214 = vdwg.mxu0
    %v215 = vld [vmem:[#allocation5] sm:$0xff]
    %v216 = vld [vmem:[#allocation5 + $0x8] sm:$0xff]
    %s217 = scalar_lea.vmem [#allocation5], 16
    %v218 = vld [vmem:[%s217] sm:$0xff]
    %v219 = vld [vmem:[%s217 + $0x8] sm:$0xff]
    %v220 = vadd.f32 %v215, %v218
    %v221 = vadd.f32 %v216, %v219
    %s222 = scalar_lea.vmem [#allocation5], 32
    %v223 = vld [vmem:[%s222] sm:$0xff]
    %v224 = vld [vmem:[%s222 + $0x8] sm:$0xff]
    %v225 = vadd.f32 %v220, %v223
    %v226 = vadd.f32 %v221, %v224
    %s227 = scalar_lea.vmem [#allocation5], 48
    %v228 = vld [vmem:[%s227] sm:$0xff]
    %v229 = vld [vmem:[%s227 + $0x8] sm:$0xff]
    %v230 = vadd.f32 %v225, %v228
    %v231 = vadd.f32 %v226, %v229
    %v232 = vmul.f32 %v230, 0.25
    %v233 = vmul.f32 %v231, 0.25
    %234 = vmatprep.subr.mxu0 0.0
    %235 = vmatpush1.msra.mxu0 %v232
    %236 = vmatprep.subr.mxu0 0.0
    %237 = vmatpush1.msra.mxu0 %v233
    %238 = vmatprep.subr.mxu0 0.0
    %239 = vmatpush1.msra.mxu0 0.0
    %240 = vmatprep.subr.mxu0 0.0
    %241 = vmatpush1.msra.mxu0 0.0
    %242 = vmatprep.subr.mxu0 0.0
    %243 = vmatpush1.msra.mxu0 0.0
    %244 = vmatprep.subr.mxu0 0.0
    %245 = vmatpush1.msra.mxu0 0.0
    %246 = vmatprep.subr.mxu0 0.0
    %247 = vmatpush1.msra.mxu0 0.0
    %248 = vmatprep.subr.mxu0 0.0
    %249 = vmatpush1.msra.mxu0 0.0
    %250 = vmatprep.subr.mxu0 0.0
    %251 = vmatpush1.msra.mxu0 0.0
    %252 = vmatprep.subr.mxu0 0.0
    %253 = vmatpush1.msra.mxu0 0.0
    %254 = vmatprep.subr.mxu0 0.0
    %255 = vmatpush1.msra.mxu0 0.0
    %256 = vmatprep.subr.mxu0 0.0
    %257 = vmatpush1.msra.mxu0 0.0
    %258 = vmatprep.subr.mxu0 0.0
    %259 = vmatpush1.msra.mxu0 0.0
    %260 = vmatprep.subr.mxu0 0.0
    %261 = vmatpush1.msra.mxu0 0.0
    %262 = vmatprep.subr.mxu0 0.0
    %263 = vmatpush1.msra.mxu0 0.0
    %264 = vmatprep.subr.mxu0 0.0
    %265 = vmatpush1.msra.mxu0 0.0
    %266 = vmatprep.subr.mxu0 0.0
    %267 = vmatpush1.msra.mxu0 0.0
    %268 = vmatprep.subr.mxu0 0.0
    %269 = vmatpush1.msra.mxu0 0.0
    %270 = vmatprep.subr.mxu0 0.0
    %271 = vmatpush1.msra.mxu0 0.0
    %272 = vmatprep.subr.mxu0 0.0
    %273 = vmatpush1.msra.mxu0 0.0
    %274 = vmatprep.subr.mxu0 0.0
    %275 = vmatpush1.msra.mxu0 0.0
    %276 = vmatprep.subr.mxu0 0.0
    %277 = vmatpush1.msra.mxu0 0.0
    %278 = vmatprep.subr.mxu0 0.0
    %279 = vmatpush1.msra.mxu0 0.0
    %280 = vmatprep.subr.mxu0 0.0
    %281 = vmatpush1.msra.mxu0 0.0
    %282 = vmatprep.subr.mxu0 0.0
    %283 = vmatpush1.msra.mxu0 0.0
    %284 = vmatprep.subr.mxu0 0.0
    %285 = vmatpush1.msra.mxu0 0.0
    %286 = vmatprep.subr.mxu0 0.0
    %287 = vmatpush1.msra.mxu0 0.0
    %288 = vmatprep.subr.mxu0 0.0
    %289 = vmatpush1.msra.mxu0 0.0
    %290 = vmatprep.subr.mxu0 0.0
    %291 = vmatpush1.msra.mxu0 0.0
    %292 = vmatprep.subr.mxu0 0.0
    %293 = vmatpush1.msra.mxu0 0.0
    %294 = vmatprep.subr.mxu0 0.0
    %295 = vmatpush1.msra.mxu0 0.0
    %296 = vmatprep.subr.mxu0 0.0
    %297 = vmatpush1.msra.mxu0 0.0
    %298 = vmatprep.mubr.f32.mxu0 0.0
    %299 = vmatmul.mubr.f32.gmra.mrb[0].mxu0 %v70
    %v300 = vpop.f32.mrb[0].mxu0
    %v301 = vadd.f32 0.0, %v300
    %v302 = vpop.f32.mrb[0].mxu0
    %303 = vdwg.mxu0
    %v305 = vsel %vm68, %v301, 0
    %307 = vmatprep.subr.mxu0 0.0
    %308 = vmatpush1.msra.mxu0 %v47
    %309 = vmatprep.subr.mxu0 0.0
    %310 = vmatpush1.msra.mxu0 %v48
    %311 = vmatprep.subr.mxu0 0.0
    %312 = vmatpush1.msra.mxu0 0.0
    %313 = vmatprep.subr.mxu0 0.0
    %314 = vmatpush1.msra.mxu0 0.0
    %315 = vmatprep.subr.mxu0 0.0
    %316 = vmatpush1.msra.mxu0 0.0
    %317 = vmatprep.subr.mxu0 0.0
    %318 = vmatpush1.msra.mxu0 0.0
    %319 = vmatprep.subr.mxu0 0.0
    %320 = vmatpush1.msra.mxu0 0.0
    %321 = vmatprep.subr.mxu0 0.0
    %322 = vmatpush1.msra.mxu0 0.0
    %323 = vmatprep.subr.mxu0 0.0
    %324 = vmatpush1.msra.mxu0 0.0
    %325 = vmatprep.subr.mxu0 0.0
    %326 = vmatpush1.msra.mxu0 0.0
    %327 = vmatprep.subr.mxu0 0.0
    %328 = vmatpush1.msra.mxu0 0.0
    %329 = vmatprep.subr.mxu0 0.0
    %330 = vmatpush1.msra.mxu0 0.0
    %331 = vmatprep.subr.mxu0 0.0
    %332 = vmatpush1.msra.mxu0 0.0
    %333 = vmatprep.subr.mxu0 0.0
    %334 = vmatpush1.msra.mxu0 0.0
    %335 = vmatprep.subr.mxu0 0.0
    %336 = vmatpush1.msra.mxu0 0.0
    %337 = vmatprep.subr.mxu0 0.0
    %338 = vmatpush1.msra.mxu0 0.0
    %339 = vmatprep.subr.mxu0 0.0
    %340 = vmatpush1.msra.mxu0 0.0
    %341 = vmatprep.subr.mxu0 0.0
    %342 = vmatpush1.msra.mxu0 0.0
    %343 = vmatprep.subr.mxu0 0.0
    %344 = vmatpush1.msra.mxu0 0.0
    %345 = vmatprep.subr.mxu0 0.0
    %346 = vmatpush1.msra.mxu0 0.0
    %347 = vmatprep.subr.mxu0 0.0
    %348 = vmatpush1.msra.mxu0 0.0
    %349 = vmatprep.subr.mxu0 0.0
    %350 = vmatpush1.msra.mxu0 0.0
    %351 = vmatprep.subr.mxu0 0.0
    %352 = vmatpush1.msra.mxu0 0.0
    %353 = vmatprep.subr.mxu0 0.0
    %354 = vmatpush1.msra.mxu0 0.0
    %355 = vmatprep.subr.mxu0 0.0
    %356 = vmatpush1.msra.mxu0 0.0
    %357 = vmatprep.subr.mxu0 0.0
    %358 = vmatpush1.msra.mxu0 0.0
    %359 = vmatprep.subr.mxu0 0.0
    %360 = vmatpush1.msra.mxu0 0.0
    %361 = vmatprep.subr.mxu0 0.0
    %362 = vmatpush1.msra.mxu0 0.0
    %363 = vmatprep.subr.mxu0 0.0
    %364 = vmatpush1.msra.mxu0 0.0
    %365 = vmatprep.subr.mxu0 0.0
    %366 = vmatpush1.msra.mxu0 0.0
    %367 = vmatprep.subr.mxu0 0.0
    %368 = vmatpush1.msra.mxu0 0.0
    %369 = vmatprep.subr.mxu0 0.0
    %370 = vmatpush1.msra.mxu0 0.0
    %371 = vmatprep.mubr.f32.mxu0 0.0
    %372 = vmatmul.mubr.f32.gmra.mrb[0].mxu0 %v305
    %v373 = vpop.f32.mrb[0].mxu0
    %v374 = vadd.f32 0.0, %v373
    %v375 = vpop.f32.mrb[0].mxu0
    %376 = vdwg.mxu0
    %v377 = vsub.f32 %v212, %v374
    %379 = vrot.lane.b32.xlu0 %v377, 1
    %v380 = vpop.permute.xlu0 %379
    %v382 = vsub.f32 %v377, %v380
    %383 = vrot.lane.b32.xlu0 %v377, 127
    %v384 = vpop.permute.xlu0 %383
    %v386 = vsub.f32 %v377, %v384
    %v387 = vrot.slane %v377, 7
    %v389 = vsub.f32 %v377, %v387
    %v390 = vrot.slane %v377, 1
    %v392 = vsub.f32 %v377, %v390
    %v393 = vmul.f32 %v382, %v382
    %v394 = vmul.f32 %v386, %v386
    %v395 = vadd.f32 %v393, %v394
    %v396 = vmul.f32 %v389, %v389
    %v397 = vadd.f32 %v395, %v396
    %v398 = vmul.f32 %v392, %v392
    %v399 = vadd.f32 %v397, %v398
    %401 = vrot.lane.b32.xlu0 %v399, 127
    %v402 = vpop.permute.xlu0 %401
    %vm404 = vcmask 28673
    %405 = vst.msk [vmem:[#allocation7 - $0x1] sm:$0x1e] %vm404, %v402
    %s406 = scalar_lea.vmem [#allocation2], 64
    %v407 = vld [vmem:[%s406] sm:$0xff]
    %v408 = vld [vmem:[%s406 + $0x8] sm:$0xff]
    %s409 = scalar_lea.vmem [#allocation2], 80
    %v410 = vld [vmem:[%s409] sm:$0xff]
    %v411 = vld [vmem:[%s409 + $0x8] sm:$0xff]
    %v412 = vadd.f32 %v407, %v410
    %v413 = vadd.f32 %v408, %v411
    %s414 = scalar_lea.vmem [#allocation2], 96
    %v415 = vld [vmem:[%s414] sm:$0xff]
    %v416 = vld [vmem:[%s414 + $0x8] sm:$0xff]
    %v417 = vadd.f32 %v412, %v415
    %v418 = vadd.f32 %v413, %v416
    %s419 = scalar_lea.vmem [#allocation2], 112
    %v420 = vld [vmem:[%s419] sm:$0xff]
    %v421 = vld [vmem:[%s419 + $0x8] sm:$0xff]
    %v422 = vadd.f32 %v417, %v420
    %v423 = vadd.f32 %v418, %v421
    %v424 = vmul.f32 %v422, 0.25
    %v425 = vmul.f32 %v423, 0.25
    %426 = vmatprep.subr.mxu0 0.0
    %427 = vmatpush1.msra.mxu0 %v424
    %428 = vmatprep.subr.mxu0 0.0
    %429 = vmatpush1.msra.mxu0 %v425
    %430 = vmatprep.subr.mxu0 0.0
    %431 = vmatpush1.msra.mxu0 0.0
    %432 = vmatprep.subr.mxu0 0.0
    %433 = vmatpush1.msra.mxu0 0.0
    %434 = vmatprep.subr.mxu0 0.0
    %435 = vmatpush1.msra.mxu0 0.0
    %436 = vmatprep.subr.mxu0 0.0
    %437 = vmatpush1.msra.mxu0 0.0
    %438 = vmatprep.subr.mxu0 0.0
    %439 = vmatpush1.msra.mxu0 0.0
    %440 = vmatprep.subr.mxu0 0.0
    %441 = vmatpush1.msra.mxu0 0.0
    %442 = vmatprep.subr.mxu0 0.0
    %443 = vmatpush1.msra.mxu0 0.0
    %444 = vmatprep.subr.mxu0 0.0
    %445 = vmatpush1.msra.mxu0 0.0
    %446 = vmatprep.subr.mxu0 0.0
    %447 = vmatpush1.msra.mxu0 0.0
    %448 = vmatprep.subr.mxu0 0.0
    %449 = vmatpush1.msra.mxu0 0.0
    %450 = vmatprep.subr.mxu0 0.0
    %451 = vmatpush1.msra.mxu0 0.0
    %452 = vmatprep.subr.mxu0 0.0
    %453 = vmatpush1.msra.mxu0 0.0
    %454 = vmatprep.subr.mxu0 0.0
    %455 = vmatpush1.msra.mxu0 0.0
    %456 = vmatprep.subr.mxu0 0.0
    %457 = vmatpush1.msra.mxu0 0.0
    %458 = vmatprep.subr.mxu0 0.0
    %459 = vmatpush1.msra.mxu0 0.0
    %460 = vmatprep.subr.mxu0 0.0
    %461 = vmatpush1.msra.mxu0 0.0
    %462 = vmatprep.subr.mxu0 0.0
    %463 = vmatpush1.msra.mxu0 0.0
    %464 = vmatprep.subr.mxu0 0.0
    %465 = vmatpush1.msra.mxu0 0.0
    %466 = vmatprep.subr.mxu0 0.0
    %467 = vmatpush1.msra.mxu0 0.0
    %468 = vmatprep.subr.mxu0 0.0
    %469 = vmatpush1.msra.mxu0 0.0
    %470 = vmatprep.subr.mxu0 0.0
    %471 = vmatpush1.msra.mxu0 0.0
    %472 = vmatprep.subr.mxu0 0.0
    %473 = vmatpush1.msra.mxu0 0.0
    %474 = vmatprep.subr.mxu0 0.0
    %475 = vmatpush1.msra.mxu0 0.0
    %476 = vmatprep.subr.mxu0 0.0
    %477 = vmatpush1.msra.mxu0 0.0
    %478 = vmatprep.subr.mxu0 0.0
    %479 = vmatpush1.msra.mxu0 0.0
    %480 = vmatprep.subr.mxu0 0.0
    %481 = vmatpush1.msra.mxu0 0.0
    %482 = vmatprep.subr.mxu0 0.0
    %483 = vmatpush1.msra.mxu0 0.0
    %484 = vmatprep.subr.mxu0 0.0
    %485 = vmatpush1.msra.mxu0 0.0
    %486 = vmatprep.subr.mxu0 0.0
    %487 = vmatpush1.msra.mxu0 0.0
    %488 = vmatprep.subr.mxu0 0.0
    %489 = vmatpush1.msra.mxu0 0.0
    %490 = vmatprep.mubr.f32.mxu0 0.0
    %491 = vmatmul.mubr.f32.gmra.mrb[0].mxu0 %v70
    %v492 = vpop.f32.mrb[0].mxu0
    %v493 = vadd.f32 0.0, %v492
    %v494 = vpop.f32.mrb[0].mxu0
    %495 = vdwg.mxu0
    %v497 = vsel %vm68, %v493, 0
    %499 = vmatprep.subr.mxu0 0.0
    %500 = vmatpush1.msra.mxu0 %v47
    %501 = vmatprep.subr.mxu0 0.0
    %502 = vmatpush1.msra.mxu0 %v48
    %503 = vmatprep.subr.mxu0 0.0
    %504 = vmatpush1.msra.mxu0 0.0
    %505 = vmatprep.subr.mxu0 0.0
    %506 = vmatpush1.msra.mxu0 0.0
    %507 = vmatprep.subr.mxu0 0.0
    %508 = vmatpush1.msra.mxu0 0.0
    %509 = vmatprep.subr.mxu0 0.0
    %510 = vmatpush1.msra.mxu0 0.0
    %511 = vmatprep.subr.mxu0 0.0
    %512 = vmatpush1.msra.mxu0 0.0
    %513 = vmatprep.subr.mxu0 0.0
    %514 = vmatpush1.msra.mxu0 0.0
    %515 = vmatprep.subr.mxu0 0.0
    %516 = vmatpush1.msra.mxu0 0.0
    %517 = vmatprep.subr.mxu0 0.0
    %518 = vmatpush1.msra.mxu0 0.0
    %519 = vmatprep.subr.mxu0 0.0
    %520 = vmatpush1.msra.mxu0 0.0
    %521 = vmatprep.subr.mxu0 0.0
    %522 = vmatpush1.msra.mxu0 0.0
    %523 = vmatprep.subr.mxu0 0.0
    %524 = vmatpush1.msra.mxu0 0.0
    %525 = vmatprep.subr.mxu0 0.0
    %526 = vmatpush1.msra.mxu0 0.0
    %527 = vmatprep.subr.mxu0 0.0
    %528 = vmatpush1.msra.mxu0 0.0
    %529 = vmatprep.subr.mxu0 0.0
    %530 = vmatpush1.msra.mxu0 0.0
    %531 = vmatprep.subr.mxu0 0.0
    %532 = vmatpush1.msra.mxu0 0.0
    %533 = vmatprep.subr.mxu0 0.0
    %534 = vmatpush1.msra.mxu0 0.0
    %535 = vmatprep.subr.mxu0 0.0
    %536 = vmatpush1.msra.mxu0 0.0
    %537 = vmatprep.subr.mxu0 0.0
    %538 = vmatpush1.msra.mxu0 0.0
    %539 = vmatprep.subr.mxu0 0.0
    %540 = vmatpush1.msra.mxu0 0.0
    %541 = vmatprep.subr.mxu0 0.0
    %542 = vmatpush1.msra.mxu0 0.0
    %543 = vmatprep.subr.mxu0 0.0
    %544 = vmatpush1.msra.mxu0 0.0
    %545 = vmatprep.subr.mxu0 0.0
    %546 = vmatpush1.msra.mxu0 0.0
    %547 = vmatprep.subr.mxu0 0.0
    %548 = vmatpush1.msra.mxu0 0.0
    %549 = vmatprep.subr.mxu0 0.0
    %550 = vmatpush1.msra.mxu0 0.0
    %551 = vmatprep.subr.mxu0 0.0
    %552 = vmatpush1.msra.mxu0 0.0
    %553 = vmatprep.subr.mxu0 0.0
    %554 = vmatpush1.msra.mxu0 0.0
    %555 = vmatprep.subr.mxu0 0.0
    %556 = vmatpush1.msra.mxu0 0.0
    %557 = vmatprep.subr.mxu0 0.0
    %558 = vmatpush1.msra.mxu0 0.0
    %559 = vmatprep.subr.mxu0 0.0
    %560 = vmatpush1.msra.mxu0 0.0
    %561 = vmatprep.subr.mxu0 0.0
    %562 = vmatpush1.msra.mxu0 0.0
    %563 = vmatprep.mubr.f32.mxu0 0.0
    %564 = vmatmul.mubr.f32.gmra.mrb[0].mxu0 %v497
    %v565 = vpop.f32.mrb[0].mxu0
    %v566 = vadd.f32 0.0, %v565
    %v567 = vpop.f32.mrb[0].mxu0
    %568 = vdwg.mxu0
    %s569 = scalar_lea.vmem [#allocation5], 64
    %v570 = vld [vmem:[%s569] sm:$0xff]
    %v571 = vld [vmem:[%s569 + $0x8] sm:$0xff]
    %s572 = scalar_lea.vmem [#allocation5], 80
    %v573 = vld [vmem:[%s572] sm:$0xff]
    %v574 = vld [vmem:[%s572 + $0x8] sm:$0xff]
    %v575 = vadd.f32 %v570, %v573
    %v576 = vadd.f32 %v571, %v574
    %s577 = scalar_lea.vmem [#allocation5], 96
    %v578 = vld [vmem:[%s577] sm:$0xff]
    %v579 = vld [vmem:[%s577 + $0x8] sm:$0xff]
    %v580 = vadd.f32 %v575, %v578
    %v581 = vadd.f32 %v576, %v579
    %s582 = scalar_lea.vmem [#allocation5], 112
    %v583 = vld [vmem:[%s582] sm:$0xff]
    %v584 = vld [vmem:[%s582 + $0x8] sm:$0xff]
    %v585 = vadd.f32 %v580, %v583
    %v586 = vadd.f32 %v581, %v584
    %v587 = vmul.f32 %v585, 0.25
    %v588 = vmul.f32 %v586, 0.25
    %589 = vmatprep.subr.mxu0 0.0
    %590 = vmatpush1.msra.mxu0 %v587
    %591 = vmatprep.subr.mxu0 0.0
    %592 = vmatpush1.msra.mxu0 %v588
    %593 = vmatprep.subr.mxu0 0.0
    %594 = vmatpush1.msra.mxu0 0.0
    %595 = vmatprep.subr.mxu0 0.0
    %596 = vmatpush1.msra.mxu0 0.0
    %597 = vmatprep.subr.mxu0 0.0
    %598 = vmatpush1.msra.mxu0 0.0
    %599 = vmatprep.subr.mxu0 0.0
    %600 = vmatpush1.msra.mxu0 0.0
    %601 = vmatprep.subr.mxu0 0.0
    %602 = vmatpush1.msra.mxu0 0.0
    %603 = vmatprep.subr.mxu0 0.0
    %604 = vmatpush1.msra.mxu0 0.0
    %605 = vmatprep.subr.mxu0 0.0
    %606 = vmatpush1.msra.mxu0 0.0
    %607 = vmatprep.subr.mxu0 0.0
    %608 = vmatpush1.msra.mxu0 0.0
    %609 = vmatprep.subr.mxu0 0.0
    %610 = vmatpush1.msra.mxu0 0.0
    %611 = vmatprep.subr.mxu0 0.0
    %612 = vmatpush1.msra.mxu0 0.0
    %613 = vmatprep.subr.mxu0 0.0
    %614 = vmatpush1.msra.mxu0 0.0
    %615 = vmatprep.subr.mxu0 0.0
    %616 = vmatpush1.msra.mxu0 0.0
    %617 = vmatprep.subr.mxu0 0.0
    %618 = vmatpush1.msra.mxu0 0.0
    %619 = vmatprep.subr.mxu0 0.0
    %620 = vmatpush1.msra.mxu0 0.0
    %621 = vmatprep.subr.mxu0 0.0
    %622 = vmatpush1.msra.mxu0 0.0
    %623 = vmatprep.subr.mxu0 0.0
    %624 = vmatpush1.msra.mxu0 0.0
    %625 = vmatprep.subr.mxu0 0.0
    %626 = vmatpush1.msra.mxu0 0.0
    %627 = vmatprep.subr.mxu0 0.0
    %628 = vmatpush1.msra.mxu0 0.0
    %629 = vmatprep.subr.mxu0 0.0
    %630 = vmatpush1.msra.mxu0 0.0
    %631 = vmatprep.subr.mxu0 0.0
    %632 = vmatpush1.msra.mxu0 0.0
    %633 = vmatprep.subr.mxu0 0.0
    %634 = vmatpush1.msra.mxu0 0.0
    %635 = vmatprep.subr.mxu0 0.0
    %636 = vmatpush1.msra.mxu0 0.0
    %637 = vmatprep.subr.mxu0 0.0
    %638 = vmatpush1.msra.mxu0 0.0
    %639 = vmatprep.subr.mxu0 0.0
    %640 = vmatpush1.msra.mxu0 0.0
    %641 = vmatprep.subr.mxu0 0.0
    %642 = vmatpush1.msra.mxu0 0.0
    %643 = vmatprep.subr.mxu0 0.0
    %644 = vmatpush1.msra.mxu0 0.0
    %645 = vmatprep.subr.mxu0 0.0
    %646 = vmatpush1.msra.mxu0 0.0
    %647 = vmatprep.subr.mxu0 0.0
    %648 = vmatpush1.msra.mxu0 0.0
    %649 = vmatprep.subr.mxu0 0.0
    %650 = vmatpush1.msra.mxu0 0.0
    %651 = vmatprep.subr.mxu0 0.0
    %652 = vmatpush1.msra.mxu0 0.0
    %653 = vmatprep.mubr.f32.mxu0 0.0
    %654 = vmatmul.mubr.f32.gmra.mrb[0].mxu0 %v70
    %v655 = vpop.f32.mrb[0].mxu0
    %v656 = vadd.f32 0.0, %v655
    %v657 = vpop.f32.mrb[0].mxu0
    %658 = vdwg.mxu0
    %v660 = vsel %vm68, %v656, 0
    %662 = vmatprep.subr.mxu0 0.0
    %663 = vmatpush1.msra.mxu0 %v47
    %664 = vmatprep.subr.mxu0 0.0
    %665 = vmatpush1.msra.mxu0 %v48
    %666 = vmatprep.subr.mxu0 0.0
    %667 = vmatpush1.msra.mxu0 0.0
    %668 = vmatprep.subr.mxu0 0.0
    %669 = vmatpush1.msra.mxu0 0.0
    %670 = vmatprep.subr.mxu0 0.0
    %671 = vmatpush1.msra.mxu0 0.0
    %672 = vmatprep.subr.mxu0 0.0
    %673 = vmatpush1.msra.mxu0 0.0
    %674 = vmatprep.subr.mxu0 0.0
    %675 = vmatpush1.msra.mxu0 0.0
    %676 = vmatprep.subr.mxu0 0.0
    %677 = vmatpush1.msra.mxu0 0.0
    %678 = vmatprep.subr.mxu0 0.0
    %679 = vmatpush1.msra.mxu0 0.0
    %680 = vmatprep.subr.mxu0 0.0
    %681 = vmatpush1.msra.mxu0 0.0
    %682 = vmatprep.subr.mxu0 0.0
    %683 = vmatpush1.msra.mxu0 0.0
    %684 = vmatprep.subr.mxu0 0.0
    %685 = vmatpush1.msra.mxu0 0.0
    %686 = vmatprep.subr.mxu0 0.0
    %687 = vmatpush1.msra.mxu0 0.0
    %688 = vmatprep.subr.mxu0 0.0
    %689 = vmatpush1.msra.mxu0 0.0
    %690 = vmatprep.subr.mxu0 0.0
    %691 = vmatpush1.msra.mxu0 0.0
    %692 = vmatprep.subr.mxu0 0.0
    %693 = vmatpush1.msra.mxu0 0.0
    %694 = vmatprep.subr.mxu0 0.0
    %695 = vmatpush1.msra.mxu0 0.0
    %696 = vmatprep.subr.mxu0 0.0
    %697 = vmatpush1.msra.mxu0 0.0
    %698 = vmatprep.subr.mxu0 0.0
    %699 = vmatpush1.msra.mxu0 0.0
    %700 = vmatprep.subr.mxu0 0.0
    %701 = vmatpush1.msra.mxu0 0.0
    %702 = vmatprep.subr.mxu0 0.0
    %703 = vmatpush1.msra.mxu0 0.0
    %704 = vmatprep.subr.mxu0 0.0
    %705 = vmatpush1.msra.mxu0 0.0
    %706 = vmatprep.subr.mxu0 0.0
    %707 = vmatpush1.msra.mxu0 0.0
    %708 = vmatprep.subr.mxu0 0.0
    %709 = vmatpush1.msra.mxu0 0.0
    %710 = vmatprep.subr.mxu0 0.0
    %711 = vmatpush1.msra.mxu0 0.0
    %712 = vmatprep.subr.mxu0 0.0
    %713 = vmatpush1.msra.mxu0 0.0
    %714 = vmatprep.subr.mxu0 0.0
    %715 = vmatpush1.msra.mxu0 0.0
    %716 = vmatprep.subr.mxu0 0.0
    %717 = vmatpush1.msra.mxu0 0.0
    %718 = vmatprep.subr.mxu0 0.0
    %719 = vmatpush1.msra.mxu0 0.0
    %720 = vmatprep.subr.mxu0 0.0
    %721 = vmatpush1.msra.mxu0 0.0
    %722 = vmatprep.subr.mxu0 0.0
    %723 = vmatpush1.msra.mxu0 0.0
    %724 = vmatprep.subr.mxu0 0.0
    %725 = vmatpush1.msra.mxu0 0.0
    %726 = vmatprep.mubr.f32.mxu0 0.0
    %727 = vmatmul.mubr.f32.gmra.mrb[0].mxu0 %v660
    %v728 = vpop.f32.mrb[0].mxu0
    %v729 = vadd.f32 0.0, %v728
    %v730 = vpop.f32.mrb[0].mxu0
    %731 = vdwg.mxu0
    %v732 = vsub.f32 %v566, %v729
    %734 = vrot.lane.b32.xlu0 %v732, 1
    %v735 = vpop.permute.xlu0 %734
    %v737 = vsub.f32 %v732, %v735
    %738 = vrot.lane.b32.xlu0 %v732, 127
    %v739 = vpop.permute.xlu0 %738
    %v741 = vsub.f32 %v732, %v739
    %v742 = vrot.slane %v732, 7
    %v744 = vsub.f32 %v732, %v742
    %v745 = vrot.slane %v732, 1
    %v747 = vsub.f32 %v732, %v745
    %v748 = vmul.f32 %v737, %v737
    %v749 = vmul.f32 %v741, %v741
    %v750 = vadd.f32 %v748, %v749
    %v751 = vmul.f32 %v744, %v744
    %v752 = vadd.f32 %v750, %v751
    %v753 = vmul.f32 %v747, %v747
    %v754 = vadd.f32 %v752, %v753
    %756 = vrot.lane.b32.xlu0 %v754, 127
    %v757 = vpop.permute.xlu0 %756
    %s759 = scalar_lea.vmem [#allocation7], 4
    %760 = vst.msk [vmem:[%s759 - $0x1] sm:$0x1e] %vm404, %v757
    // Predicated region
    $region26: #{tpu_custom_call.1} parent=1 // pred_check
      _
    $region27: #{tpu_custom_call.1} parent=1 // pred_check_branch
      %762 = sbr.rel (0) target = $region29
    $region28: #{tpu_custom_call.1} parent=1 // pred_region
      %s764 = ssub.s32 128, 128
      %765 = vsyncadd [#allocation4], %s764
      %s766 = sshll.u32 [#allocation7], 4
      %s767 = int_to_ptr.vmem [resolvable:$true] %s766
      %772 = dma.vmem_to_hbm [thread:$0]  %s767, 128, %s4, [#allocation4], 64, 64, 4
    $region29: #{tpu_custom_call.1} parent=1 // pred_fallthru
      _
    // Predicated region
    $region30: #{tpu_custom_call.1} parent=1 // pred_check
      _
    $region31: #{tpu_custom_call.1} parent=1 // pred_check_branch
      %774 = sbr.rel (0) target = $region33
    $region32: #{tpu_custom_call.1} parent=1 // pred_region
      %775 = dma.done [#allocation4], 128
    $region33: #{tpu_custom_call.1} parent=1 // pred_fallthru
      _
    %776 = vsyncpa [#allocation3], 1
    %777 = vsyncpa [#allocation6], 1
    %778 = vsyncpa [#allocation4], 1

</llo_original>
